<compile_context>
chip_gen: v5e
topology: v5e:2x2
jax: 0.10.0
libtpu: 0.0.40
codegen_flags: <defaults>
</compile_context>

<pallas_src>
import functools

import jax
import jax.numpy as jnp
from jax.experimental import pallas as pl
from jax.experimental.pallas import tpu as pltpu


# ---------------- configuration (args of the PyTorch module) ----------------
class Args:
    n_agents = 4
    n_entities = 8
    entity_shape = 16
    entity_last_action = False      # entity_dim == entity_shape
    n_actions = 5                   # unused since entity_last_action=False
    hypernet_embed = 64
    mixing_embed_dim = 32


def _round_up(x, m):
    return ((x + m - 1) // m) * m


# ------------------------------- Pallas kernel -------------------------------
def _hypernet_kernel(x_ref, emask_ref, *rest, apply_agent_mask):
    if apply_agent_mask:
        exp_e_ref, exp_a_ref, w1_ref, b1_ref, w2_ref, b2_ref, out_ref = rest
    else:
        exp_e_ref, w1_ref, b1_ref, w2_ref, b2_ref, out_ref = rest

    x = x_ref[...]                                       # (TB, in_dim), compute dtype

    # int8 {0,1} mask -> bf16 (exact); both mask-expand matmuls use bf16
    # operands so the MXU never sees f32 for them (avoids multi-pass on v5e).
    emask = emask_ref[...].astype(jnp.bfloat16)          # (TB, ne)

    # masked_fill(entity_mask, 0):  keep[r, j] = 1 - entity_mask[r, j // entity_dim]
    keep_e = 1.0 - jnp.dot(emask, exp_e_ref[...],
                           preferred_element_type=jnp.float32)      # (TB, in_dim)
    xm = x * keep_e.astype(x.dtype)

    # fc1 + ReLU (f32 accumulation on the MXU, f32 bias)
    h = jnp.dot(xm, w1_ref[...], preferred_element_type=jnp.float32) + b1_ref[...]
    h = jnp.maximum(h, 0.0).astype(w2_ref.dtype)

    # fc2 (f32 accumulation, f32 bias)
    y = jnp.dot(h, w2_ref[...], preferred_element_type=jnp.float32) + b2_ref[...]

    # matrix mode: masked_fill(agent_mask, 0).  The agent mask is just the
    # first n_agents columns of entity_mask; exp_a encodes that selection.
    if apply_agent_mask:
        keep_a = 1.0 - jnp.dot(emask, exp_a_ref[...],
                               preferred_element_type=jnp.float32)  # (TB, out_dim_p)
        y = y * keep_a

    out_ref[...] = y.astype(out_ref.dtype)


# ------------------------------- wrapper -------------------------------------
def masked_hypernet_forward(entities, entity_mask, params, args, mode="matrix",
                            compute_dtype=jnp.bfloat16, batch_tile=2048):
    """entities: (bs, ne, ed) f32; entity_mask: (bs, ne) bool (True = masked)."""
    bs, ne, ed = entities.shape
    w1, b1, w2, b2 = params
    in_dim = ne * ed
    hyp = w1.shape[1]
    out_dim = w2.shape[1]
    na = args.n_agents
    embed = args.mixing_embed_dim

    # --- lane-dense hidden / output: pad to multiples of 128 (exact: zeros) ---
    hyp_p = _round_up(hyp, 128)
    out_dim_p = _round_up(out_dim, 128)
    w1_p = jnp.pad(w1, ((0, 0), (0, hyp_p - hyp))).astype(compute_dtype)
    b1_p = jnp.pad(b1, ((0, hyp_p - hyp),)).reshape(1, hyp_p).astype(jnp.float32)
    w2_p = jnp.pad(w2, ((0, hyp_p - hyp), (0, out_dim_p - out_dim))).astype(compute_dtype)
    b2_p = jnp.pad(b2, ((0, out_dim_p - out_dim),)).reshape(1, out_dim_p).astype(jnp.float32)

    # --- 0/1 expansion matrices, built once, resident in VMEM (bf16: exact) ---
    rows = jnp.arange(ne)[:, None]
    cols_e = jnp.arange(in_dim)[None, :]
    expand_e = ((cols_e // ed) == rows).astype(jnp.bfloat16)          # (ne, in_dim)

    apply_agent_mask = (mode == "matrix")
    if apply_agent_mask:
        cols_a = jnp.arange(out_dim_p)[None, :]
        expand_a = (((cols_a // embed) == rows)
                    & (rows < na) & (cols_a < out_dim)).astype(jnp.bfloat16)  # (ne, out_dim_p)

    # --- batch tiling (rows padded so bs_p is a multiple of the tile) ---
    bs32 = _round_up(bs, 32)                 # 32: int8 mask sublane packing
    tb = min(_round_up(batch_tile, 32), bs32)
    # v7x megacore: keep >= 2 grid steps when the batch is big enough to split.
    if bs32 >= 512 and bs32 <= tb:
        tb = _round_up((bs32 + 1) // 2, 32)
    bs_p = _round_up(bs, tb)
    pad_rows = bs_p - bs

    x_flat = entities.reshape(bs, in_dim).astype(compute_dtype)
    x_flat = jnp.pad(x_flat, ((0, pad_rows), (0, 0)))
    emask = jnp.pad(entity_mask.astype(jnp.int8), ((0, pad_rows), (0, 0)))

    inputs = [x_flat, emask, expand_e]
    in_specs = [pl.BlockSpec((tb, in_dim), lambda i: (i, 0)),
                pl.BlockSpec((tb, ne), lambda i: (i, 0)),
                pl.BlockSpec((ne, in_dim), lambda i: (0, 0))]
    if apply_agent_mask:
        inputs.append(expand_a)
        in_specs.append(pl.BlockSpec((ne, out_dim_p), lambda i: (0, 0)))

    # weights / biases: full-extent blocks with constant index_map -> fetched
    # once and resident in VMEM across all grid steps.
    inputs += [w1_p, b1_p, w2_p, b2_p]
    in_specs += [pl.BlockSpec((in_dim, hyp_p), lambda i: (0, 0)),
                 pl.BlockSpec((1, hyp_p), lambda i: (0, 0)),
                 pl.BlockSpec((hyp_p, out_dim_p), lambda i: (0, 0)),
                 pl.BlockSpec((1, out_dim_p), lambda i: (0, 0))]

    kernel = functools.partial(_hypernet_kernel, apply_agent_mask=apply_agent_mask)

    # VMEM budget: double-buffered x / mask / out tiles + weight set (x2),
    # floored at the 16 MiB v5e scoped default, capped at v7x physical 64 MiB.
    csize = jnp.dtype(compute_dtype).itemsize
    tile_bytes = tb * (in_dim * csize + out_dim_p * csize + 128)   # x + out + int8 mask (lane-padded)
    weight_bytes = ((in_dim * hyp_p + hyp_p * out_dim_p) * csize
                    + (hyp_p + out_dim_p) * 4 + ne * (in_dim + out_dim_p) * 2)
    vmem_limit = int(min(max(2 * (tile_bytes + weight_bytes) + (2 << 20), 16 << 20),
                         64 << 20))

    out2d = pl.pallas_call(
        kernel,
        out_shape=jax.ShapeDtypeStruct((bs_p, out_dim_p), compute_dtype),
        grid=(bs_p // tb,),
        in_specs=in_specs,
        out_specs=pl.BlockSpec((tb, out_dim_p), lambda i: (i, 0)),
        compiler_params=pltpu.CompilerParams(
            dimension_semantics=("parallel",),
            vmem_limit_bytes=vmem_limit),
    )(*inputs)

    # Only slice when padding was actually added (the slice is a full HBM copy).
    if pad_rows or out_dim_p != out_dim:
        out2d = out2d[:bs, :out_dim]
    if mode == "matrix":
        return out2d.reshape(bs, na, embed)
    return out2d


# --------------------------- reference (pure JAX) -----------------------------
def masked_hypernet_ref(entities, entity_mask, params, args, mode="matrix"):
    bs, ne, ed = entities.shape
    w1, b1, w2, b2 = params
    ent = jnp.where(entity_mask[:, :, None], 0.0, entities)
    x = ent.reshape(bs, -1)
    x1 = jax.nn.relu(x @ w1 + b1)
    x2 = x1 @ w2 + b2
    if mode == "matrix":
        x2 = x2.reshape(bs, args.n_agents, args.mixing_embed_dim)
        agent_mask = entity_mask[:, :args.n_agents]
        x2 = jnp.where(agent_mask[:, :, None], 0.0, x2)
    return x2


# ------------------------------- main -----------------------------------------
if __name__ == "__main__":
    args = Args()
    entity_dim = args.entity_shape + (args.n_actions if args.entity_last_action else 0)
    in_dim = entity_dim * args.n_entities
    hyp = args.hypernet_embed

    key = jax.random.PRNGKey(0)
    k_ent, k_msk, k_w1, k_b1, k_w2, k_b2, k_ent2, k_msk2 = jax.random.split(key, 8)

    # deterministic PyTorch-Linear-style init: U(-1/sqrt(fan_in), 1/sqrt(fan_in))
    lim1 = 1.0 / jnp.sqrt(in_dim)
    lim2 = 1.0 / jnp.sqrt(hyp)

    def make_params(out_dim):
        w1 = jax.random.uniform(k_w1, (in_dim, hyp), jnp.float32, -lim1, lim1)
        b1 = jax.random.uniform(k_b1, (hyp,), jnp.float32, -lim1, lim1)
        w2 = jax.random.uniform(k_w2, (hyp, out_dim), jnp.float32, -lim2, lim2)
        b2 = jax.random.uniform(k_b2, (out_dim,), jnp.float32, -lim2, lim2)
        return (w1, b1, w2, b2)

    # --- test 1: matrix mode, exact f32 compute path, tiny batch ---
    bs = 2
    entities = jax.random.normal(k_ent, (bs, args.n_entities, entity_dim), jnp.float32)
    entity_mask = jax.random.bernoulli(k_msk, 0.3, (bs, args.n_entities))  # True = masked
    params_m = make_params(args.mixing_embed_dim * args.n_agents)

    out = jax.block_until_ready(
        masked_hypernet_forward(entities, entity_mask, params_m, args, "matrix",
                                compute_dtype=jnp.float32))
    ref = masked_hypernet_ref(entities, entity_mask, params_m, args, "matrix")
    assert out.shape == (bs, args.n_agents, args.mixing_embed_dim)
    assert jnp.allclose(out, ref, atol=1e-4, rtol=1e-4)

    # --- test 2: matrix mode, default bf16 perf path, multi-step grid
    #     (bs=600 -> tile split so the grid has 2 steps; padded rows sliced off) ---
    bs2 = 600
    entities2 = jax.random.normal(k_ent2, (bs2, args.n_entities, entity_dim), jnp.float32)
    entity_mask2 = jax.random.bernoulli(k_msk2, 0.3, (bs2, args.n_entities))
    out2 = jax.block_until_ready(
        masked_hypernet_forward(entities2, entity_mask2, params_m, args, "matrix"))
    ref2 = masked_hypernet_ref(entities2, entity_mask2, params_m, args, "matrix")
    assert out2.shape == (bs2, args.n_agents, args.mixing_embed_dim)
    assert jnp.allclose(out2.astype(jnp.float32), ref2, atol=5e-2, rtol=5e-2)

    # --- test 3: vector mode (no agent mask; out_dim padded to lane width) ---
    params_v = make_params(args.mixing_embed_dim)
    out3 = jax.block_until_ready(
        masked_hypernet_forward(entities, entity_mask, params_v, args, "vector",
                                compute_dtype=jnp.float32))
    ref3 = masked_hypernet_ref(entities, entity_mask, params_v, args, "vector")
    assert out3.shape == (bs, args.mixing_embed_dim)
    assert jnp.allclose(out3, ref3, atol=1e-4, rtol=1e-4)

    print("KERNEL_OK")
</pallas_src>

<mosaic_0001>
module attributes {stable_mosaic.version = 11 : i64} {
  func.func @_hypernet_kernel(%arg0: i32, %arg1: memref<32x128xf32, #tpu.memory_space<vmem>>, %arg2: memref<32x8xi8, #tpu.memory_space<vmem>>, %arg3: memref<8x128xbf16, #tpu.memory_space<vmem>>, %arg4: memref<8x128xbf16, #tpu.memory_space<vmem>>, %arg5: memref<128x128xf32, #tpu.memory_space<vmem>>, %arg6: memref<1x128xf32, #tpu.memory_space<vmem>>, %arg7: memref<128x128xf32, #tpu.memory_space<vmem>>, %arg8: memref<1x128xf32, #tpu.memory_space<vmem>>, %arg9: memref<32x128xf32, #tpu.memory_space<vmem>>) attributes {dimension_semantics = [#tpu.dimension_semantics<parallel>], iteration_bounds = array<i64: 1>, scalar_prefetch = 0 : i64, scratch_operands = 0 : i64, tpu.core_type = #tpu.core_type<tc>, window_params = [{transform_indices = @transform_0, window_bounds = array<i64: 32, 128>}, {transform_indices = @transform_1, window_bounds = array<i64: 32, 8>}, {pipeline_mode = #tpu.pipeline_mode<synchronous>, transform_indices = @transform_2, window_bounds = array<i64: 8, 128>}, {pipeline_mode = #tpu.pipeline_mode<synchronous>, transform_indices = @transform_3, window_bounds = array<i64: 8, 128>}, {pipeline_mode = #tpu.pipeline_mode<synchronous>, transform_indices = @transform_4, window_bounds = array<i64: 128, 128>}, {pipeline_mode = #tpu.pipeline_mode<synchronous>, transform_indices = @transform_5, window_bounds = array<i64: 1, 128>}, {pipeline_mode = #tpu.pipeline_mode<synchronous>, transform_indices = @transform_6, window_bounds = array<i64: 128, 128>}, {pipeline_mode = #tpu.pipeline_mode<synchronous>, transform_indices = @transform_7, window_bounds = array<i64: 1, 128>}, {transform_indices = @transform_8, window_bounds = array<i64: 32, 128>}]} {
    %c0 = arith.constant 0 : index
    %c0_0 = arith.constant 0 : index
    %0 = vector.load %arg1[%c0, %c0_0] : memref<32x128xf32, #tpu.memory_space<vmem>>, vector<32x128xf32>
    %c0_1 = arith.constant 0 : index
    %c0_2 = arith.constant 0 : index
    %1 = vector.load %arg2[%c0_1, %c0_2] : memref<32x8xi8, #tpu.memory_space<vmem>>, vector<32x8xi8>
    %2 = arith.sitofp %1 : vector<32x8xi8> to vector<32x8xbf16>
    %c0_3 = arith.constant 0 : index
    %c0_4 = arith.constant 0 : index
    %3 = vector.load %arg3[%c0_3, %c0_4] : memref<8x128xbf16, #tpu.memory_space<vmem>>, vector<8x128xbf16>
    %cst = arith.constant dense<0.000000e+00> : vector<32x128xf32>
    %4 = tpu.matmul %2, %3, %cst {dimension_numbers = #tpu.dot_dimension_numbers<[1], [0], [0], [1], [0, 0, 1, 1], [], []>} : vector<32x8xbf16>, vector<8x128xbf16>, vector<32x128xf32> -> vector<32x128xf32>
    %cst_5 = arith.constant 1.000000e+00 : f32
    %5 = vector.broadcast %cst_5 : f32 to vector<32x128xf32>
    %6 = arith.subf %5, %4 : vector<32x128xf32>
    %7 = arith.mulf %0, %6 : vector<32x128xf32>
    %c0_6 = arith.constant 0 : index
    %c0_7 = arith.constant 0 : index
    %8 = vector.load %arg5[%c0_6, %c0_7] : memref<128x128xf32, #tpu.memory_space<vmem>>, vector<128x128xf32>
    %cst_8 = arith.constant dense<0.000000e+00> : vector<32x128xf32>
    %9 = tpu.matmul %7, %8, %cst_8 {dimension_numbers = #tpu.dot_dimension_numbers<[1], [0], [0], [1], [0, 0, 1, 1], [], []>} : vector<32x128xf32>, vector<128x128xf32>, vector<32x128xf32> -> vector<32x128xf32>
    %c0_9 = arith.constant 0 : index
    %c0_10 = arith.constant 0 : index
    %10 = vector.load %arg6[%c0_9, %c0_10] : memref<1x128xf32, #tpu.memory_space<vmem>>, vector<1x128xf32>
    %11 = vector.broadcast %10 : vector<1x128xf32> to vector<32x128xf32>
    %12 = arith.addf %9, %11 : vector<32x128xf32>
    %cst_11 = arith.constant 0.000000e+00 : f32
    %13 = vector.broadcast %cst_11 : f32 to vector<32x128xf32>
    %14 = arith.maximumf %12, %13 : vector<32x128xf32>
    %c0_12 = arith.constant 0 : index
    %c0_13 = arith.constant 0 : index
    %15 = vector.load %arg7[%c0_12, %c0_13] : memref<128x128xf32, #tpu.memory_space<vmem>>, vector<128x128xf32>
    %cst_14 = arith.constant dense<0.000000e+00> : vector<32x128xf32>
    %16 = tpu.matmul %14, %15, %cst_14 {dimension_numbers = #tpu.dot_dimension_numbers<[1], [0], [0], [1], [0, 0, 1, 1], [], []>} : vector<32x128xf32>, vector<128x128xf32>, vector<32x128xf32> -> vector<32x128xf32>
    %c0_15 = arith.constant 0 : index
    %c0_16 = arith.constant 0 : index
    %17 = vector.load %arg8[%c0_15, %c0_16] : memref<1x128xf32, #tpu.memory_space<vmem>>, vector<1x128xf32>
    %18 = vector.broadcast %17 : vector<1x128xf32> to vector<32x128xf32>
    %19 = arith.addf %16, %18 : vector<32x128xf32>
    %c0_17 = arith.constant 0 : index
    %c0_18 = arith.constant 0 : index
    %20 = vector.load %arg4[%c0_17, %c0_18] : memref<8x128xbf16, #tpu.memory_space<vmem>>, vector<8x128xbf16>
    %cst_19 = arith.constant dense<0.000000e+00> : vector<32x128xf32>
    %21 = tpu.matmul %2, %20, %cst_19 {dimension_numbers = #tpu.dot_dimension_numbers<[1], [0], [0], [1], [0, 0, 1, 1], [], []>} : vector<32x8xbf16>, vector<8x128xbf16>, vector<32x128xf32> -> vector<32x128xf32>
    %cst_20 = arith.constant 1.000000e+00 : f32
    %22 = vector.broadcast %cst_20 : f32 to vector<32x128xf32>
    %23 = arith.subf %22, %21 : vector<32x128xf32>
    %24 = arith.mulf %19, %23 : vector<32x128xf32>
    %c0_21 = arith.constant 0 : index
    %c0_22 = arith.constant 0 : index
    %25 = vector.load %arg9[%c0_21, %c0_22] : memref<32x128xf32, #tpu.memory_space<vmem>>, vector<32x128xf32>
    tpu.vector_store %arg9[%c0_21, %c0_22], %24 {strides = array<i32>} : memref<32x128xf32, #tpu.memory_space<vmem>>, vector<32x128xf32>,
    return
  }
  func.func @transform_0(%arg0: i32) -> (i32, i32) {
    %c0_i32 = arith.constant 0 : i32
    %c0_i32_0 = arith.constant 0 : i32
    return %arg0, %c0_i32 : i32, i32
  }
  func.func @transform_1(%arg0: i32) -> (i32, i32) {
    %c0_i32 = arith.constant 0 : i32
    %c0_i32_0 = arith.constant 0 : i32
    return %arg0, %c0_i32 : i32, i32
  }
  func.func @transform_2(%arg0: i32) -> (i32, i32) {
    %c0_i32 = arith.constant 0 : i32
    %c0_i32_0 = arith.constant 0 : i32
    %c0_i32_1 = arith.constant 0 : i32
    return %c0_i32, %c0_i32_0 : i32, i32
  }
  func.func @transform_3(%arg0: i32) -> (i32, i32) {
    %c0_i32 = arith.constant 0 : i32
    %c0_i32_0 = arith.constant 0 : i32
    %c0_i32_1 = arith.constant 0 : i32
    return %c0_i32, %c0_i32_0 : i32, i32
  }
  func.func @transform_4(%arg0: i32) -> (i32, i32) {
    %c0_i32 = arith.constant 0 : i32
    %c0_i32_0 = arith.constant 0 : i32
    %c0_i32_1 = arith.constant 0 : i32
    return %c0_i32, %c0_i32_0 : i32, i32
  }
  func.func @transform_5(%arg0: i32) -> (i32, i32) {
    %c0_i32 = arith.constant 0 : i32
    %c0_i32_0 = arith.constant 0 : i32
    %c0_i32_1 = arith.constant 0 : i32
    return %c0_i32, %c0_i32_0 : i32, i32
  }
  func.func @transform_6(%arg0: i32) -> (i32, i32) {
    %c0_i32 = arith.constant 0 : i32
    %c0_i32_0 = arith.constant 0 : i32
    %c0_i32_1 = arith.constant 0 : i32
    return %c0_i32, %c0_i32_0 : i32, i32
  }
  func.func @transform_7(%arg0: i32) -> (i32, i32) {
    %c0_i32 = arith.constant 0 : i32
    %c0_i32_0 = arith.constant 0 : i32
    %c0_i32_1 = arith.constant 0 : i32
    return %c0_i32, %c0_i32_0 : i32, i32
  }
  func.func @transform_8(%arg0: i32) -> (i32, i32) {
    %c0_i32 = arith.constant 0 : i32
    %c0_i32_0 = arith.constant 0 : i32
    return %arg0, %c0_i32 : i32, i32
  }
}

</mosaic_0001>

<llo_original>
// kernel: tpu_custom_call.1
$region0: #{tpu_custom_call.1}
  #allocation0 [shape = 'u32[]', space=smem, size = 0x4, offset = 0x4, fixed_abs, tag = 'smem constant byte address 0x4 - core index']
  #allocation1 [shape = 'u32[72,128]{1,0:T(1,128)}', space=vmem, size = 0x9000, scoped, tag = 'internal scratch']
  %s0 = inlined_call_operand.hbm [shape: f32[32,128], index: 0, kind: input, shape index: {}]
  %s1 = inlined_call_operand.vmem [shape: s8[32,8], index: 1, kind: input, shape index: {}]
  %s2 = inlined_call_operand.vmem [shape: bf16[8,128], index: 2, kind: input, shape index: {}]
  %s3 = inlined_call_operand.vmem [shape: bf16[8,128], index: 3, kind: input, shape index: {}]
  %s4 = inlined_call_operand.hbm [shape: f32[128,128], index: 4, kind: input, shape index: {}]
  %s5 = inlined_call_operand.vmem [shape: f32[1,128], index: 5, kind: input, shape index: {}]
  %s6 = inlined_call_operand.hbm [shape: f32[128,128], index: 6, kind: input, shape index: {}]
  %s7 = inlined_call_operand.vmem [shape: f32[1,128], index: 7, kind: input, shape index: {}]
  %s8 = inlined_call_operand.hbm [shape: f32[32,128], index: 8, kind: output, shape index: {}]
  %s9 = sld [smem:[#allocation0]]
  $region54: #{tpu_custom_call.1} parent=0
    _
  %s11 = ssub.s32 1, %s9
  %s12 = scalar_select 0, %s11, %s9
  $region1: #{tpu_custom_call.1} parent=0
    #allocation2 [shape = 'u8[16384]{0}', space=vmem, size = 0x4000, scoped, tag = 'input window, operand 0, single buffered']
    #allocation3 [shape = 's32[1]{0}', space=sflag, size = 0x4, scoped, tag = 'scoped memory for tpu_custom_call.1']
    #allocation4 [shape = 's32[1]{0}', space=sflag, size = 0x4, scoped, tag = 'scoped memory for tpu_custom_call.1']
    #allocation5 [shape = 'u8[65536]{0}', space=vmem, size = 0x10000, scoped, tag = 'input window, operand 4, single buffered']
    #allocation6 [shape = 's32[1]{0}', space=sflag, size = 0x4, scoped, tag = 'scoped memory for tpu_custom_call.1']
    #allocation7 [shape = 'u8[65536]{0}', space=vmem, size = 0x10000, scoped, tag = 'input window, operand 6, single buffered']
    #allocation8 [shape = 'u8[16384]{0}', space=vmem, size = 0x4000, scoped, tag = 'output window, operand 0, single buffered']
    %13 = vsyncpa [#allocation3], 0
    %14 = vsyncpa [#allocation6], 0
    %15 = vsyncpa [#allocation4], 0
    // Predicated region
    $region2: #{tpu_custom_call.1} parent=1 // pred_check
      _
    $region3: #{tpu_custom_call.1} parent=1 // pred_check_branch
      %17 = sbr.rel (0) target = $region5
    $region4: #{tpu_custom_call.1} parent=1 // pred_region
      %19 = vsyncadd [#allocation3], 0
      %s20 = sshll.u32 %s0, 4
      %s21 = int_to_ptr.hbm [resolvable:$true] %s20
      %s22 = sshll.u32 [#allocation2], 4
      %s23 = int_to_ptr.vmem [resolvable:$true] %s22
      %28 = dma.hbm_to_vmem [thread:$0]  %s21, 512, %s23, [#allocation3], 128, 128, 8
    $region5: #{tpu_custom_call.1} parent=1 // pred_fallthru
      _
    // Predicated region
    $region6: #{tpu_custom_call.1} parent=1 // pred_check
      _
    $region7: #{tpu_custom_call.1} parent=1 // pred_check_branch
      %30 = sbr.rel (0) target = $region9
    $region8: #{tpu_custom_call.1} parent=1 // pred_region
      _
    $region9: #{tpu_custom_call.1} parent=1 // pred_fallthru
      _
    // Predicated region
    $region10: #{tpu_custom_call.1} parent=1 // pred_check
      _
    $region11: #{tpu_custom_call.1} parent=1 // pred_check_branch
      %32 = sbr.rel (0) target = $region13
    $region12: #{tpu_custom_call.1} parent=1 // pred_region
      _
    $region13: #{tpu_custom_call.1} parent=1 // pred_fallthru
      _
    // Predicated region
    $region14: #{tpu_custom_call.1} parent=1 // pred_check
      _
    $region15: #{tpu_custom_call.1} parent=1 // pred_check_branch
      %34 = sbr.rel (0) target = $region17
    $region16: #{tpu_custom_call.1} parent=1 // pred_region
      _
    $region17: #{tpu_custom_call.1} parent=1 // pred_fallthru
      _
    // Predicated region
    $region18: #{tpu_custom_call.1} parent=1 // pred_check
      _
    $region19: #{tpu_custom_call.1} parent=1 // pred_check_branch
      %36 = sbr.rel (0) target = $region21
    $region20: #{tpu_custom_call.1} parent=1 // pred_region
      %38 = vsyncadd [#allocation6], 0
      %s39 = sshll.u32 %s4, 4
      %s40 = int_to_ptr.hbm [resolvable:$true] %s39
      %s41 = sshll.u32 [#allocation5], 4
      %s42 = int_to_ptr.vmem [resolvable:$true] %s41
      %47 = dma.hbm_to_vmem [thread:$0]  %s40, 2048, %s42, [#allocation6], 128, 128, 8
    $region21: #{tpu_custom_call.1} parent=1 // pred_fallthru
      _
    // Predicated region
    $region22: #{tpu_custom_call.1} parent=1 // pred_check
      _
    $region23: #{tpu_custom_call.1} parent=1 // pred_check_branch
      %49 = sbr.rel (0) target = $region25
    $region24: #{tpu_custom_call.1} parent=1 // pred_region
      _
    $region25: #{tpu_custom_call.1} parent=1 // pred_fallthru
      _
    // Predicated region
    $region26: #{tpu_custom_call.1} parent=1 // pred_check
      _
    $region27: #{tpu_custom_call.1} parent=1 // pred_check_branch
      %51 = sbr.rel (0) target = $region29
    $region28: #{tpu_custom_call.1} parent=1 // pred_region
      %53 = vsyncadd [#allocation6], 0
      %s54 = sshll.u32 %s6, 4
      %s55 = int_to_ptr.hbm [resolvable:$true] %s54
      %s56 = sshll.u32 [#allocation7], 4
      %s57 = int_to_ptr.vmem [resolvable:$true] %s56
      %62 = dma.hbm_to_vmem [thread:$0]  %s55, 2048, %s57, [#allocation6], 128, 128, 8
    $region29: #{tpu_custom_call.1} parent=1 // pred_fallthru
      _
    // Predicated region
    $region30: #{tpu_custom_call.1} parent=1 // pred_check
      _
    $region31: #{tpu_custom_call.1} parent=1 // pred_check_branch
      %64 = sbr.rel (0) target = $region33
    $region32: #{tpu_custom_call.1} parent=1 // pred_region
      _
    $region33: #{tpu_custom_call.1} parent=1 // pred_fallthru
      _
    // Predicated region
    $region34: #{tpu_custom_call.1} parent=1 // pred_check
      _
    $region35: #{tpu_custom_call.1} parent=1 // pred_check_branch
      %66 = sbr.rel (0) target = $region37
    $region36: #{tpu_custom_call.1} parent=1 // pred_region
      %68 = dma.done [#allocation3], 512
    $region37: #{tpu_custom_call.1} parent=1 // pred_fallthru
      _
    // Predicated region
    $region38: #{tpu_custom_call.1} parent=1 // pred_check
      _
    $region39: #{tpu_custom_call.1} parent=1 // pred_check_branch
      %70 = sbr.rel (0) target = $region41
    $region40: #{tpu_custom_call.1} parent=1 // pred_region
      %72 = dma.done [#allocation6], 2048
    $region41: #{tpu_custom_call.1} parent=1 // pred_fallthru
      _
    // Predicated region
    $region42: #{tpu_custom_call.1} parent=1 // pred_check
      _
    $region43: #{tpu_custom_call.1} parent=1 // pred_check_branch
      %74 = sbr.rel (0) target = $region45
    $region44: #{tpu_custom_call.1} parent=1 // pred_region
      %76 = dma.done [#allocation6], 2048
    $region45: #{tpu_custom_call.1} parent=1 // pred_fallthru
      _
    %v78 = vld [vmem:[#allocation2] sm:$0xff]
    %v79 = vld [vmem:[#allocation2 + $0x8] sm:$0xff]
    %v80 = vld [vmem:[#allocation2 + $0x10] sm:$0xff]
    %v81 = vld [vmem:[#allocation2 + $0x18] sm:$0xff]
    %v82 = vld [vmem:[%s1] sm:$0x3]
    %v83 = vld [vmem:[%s1 + $0x2] sm:$0x3]
    %v84 = vld [vmem:[%s1 + $0x4] sm:$0x3]
    %v85 = vld [vmem:[%s1 + $0x6] sm:$0x3]
    %v86 = vunpack.c.0.s8 %v82
    %v87 = vunpack.c.0.s8 %v83
    %v88 = vunpack.c.0.s8 %v84
    %v89 = vunpack.c.0.s8 %v85
    %v90 = vcvt.s32.f32 %v86
    %v91 = vcvt.s32.f32 %v87
    %v92 = vcvt.s32.f32 %v88
    %v93 = vcvt.s32.f32 %v89
    %v94 = vpack.c.bf16 %v91, %v90
    %v95 = vpack.c.bf16 %v93, %v92
    %v96 = vld [vmem:[%s2] sm:$0xf]
    %vm97 = vcmask 64512
    %v99 = vsel %vm97, %v94, 0
    %v102 = vsel %vm97, %v95, 0
    %vm104 = vcmask 1043456
    %v106 = vsel %vm104, %v96, 0
    %108 = vmatpush.bf16.msra.mxu0 0
    %109 = vmatpush.bf16.msra.mxu0 0
    %110 = vmatpush.bf16.msra.mxu0 0
    %111 = vmatpush.bf16.msra.mxu0 0
    %112 = vmatpush.bf16.msra.mxu0 0
    %113 = vmatpush.bf16.msra.mxu0 0
    %114 = vmatpush.bf16.msra.mxu0 0
    %115 = vmatpush.bf16.msra.mxu0 %v106
    %116 = vmatmul.bf16.gmra.mxu0 %v99
    %v117 = vpop.f32.mrf.mxu0
    %v118 = vadd.f32 0.0, %v117
    %v119 = vpop.f32.mrf.mxu0
    %v120 = vadd.f32 0.0, %v119
    %121 = vmatmul.bf16.gmra.mxu0 %v102
    %v122 = vpop.f32.mrf.mxu0
    %v123 = vadd.f32 0.0, %v122
    %v124 = vpop.f32.mrf.mxu0
    %v125 = vadd.f32 0.0, %v124
    %126 = vdwg.mxu0
    %v127 = vsub.f32 1.0, %v118
    %v128 = vsub.f32 1.0, %v120
    %v129 = vsub.f32 1.0, %v123
    %v130 = vsub.f32 1.0, %v125
    %v131 = vmul.f32 %v78, %v127
    %v132 = vmul.f32 %v79, %v128
    %v133 = vmul.f32 %v80, %v129
    %v134 = vmul.f32 %v81, %v130
    %v135 = vld [vmem:[#allocation5] sm:$0xff]
    %v136 = vld [vmem:[#allocation5 + $0x8] sm:$0xff]
    %v137 = vld [vmem:[#allocation5 + $0x10] sm:$0xff]
    %v138 = vld [vmem:[#allocation5 + $0x18] sm:$0xff]
    %v139 = vld [vmem:[#allocation5 + $0x20] sm:$0xff]
    %v140 = vld [vmem:[#allocation5 + $0x28] sm:$0xff]
    %v141 = vld [vmem:[#allocation5 + $0x30] sm:$0xff]
    %v142 = vld [vmem:[#allocation5 + $0x38] sm:$0xff]
    %v143 = vld [vmem:[#allocation5 + $0x40] sm:$0xff]
    %v144 = vld [vmem:[#allocation5 + $0x48] sm:$0xff]
    %v145 = vld [vmem:[#allocation5 + $0x50] sm:$0xff]
    %v146 = vld [vmem:[#allocation5 + $0x58] sm:$0xff]
    %v147 = vld [vmem:[#allocation5 + $0x60] sm:$0xff]
    %v148 = vld [vmem:[#allocation5 + $0x68] sm:$0xff]
    %v149 = vld [vmem:[#allocation5 + $0x70] sm:$0xff]
    %v150 = vld [vmem:[#allocation5 + $0x78] sm:$0xff]
    %v151 = vld [vmem:[%s5] sm:$0x1]
    %v153 = vperm.slane %v151, 0
    %155 = vmatpush.msra.mxu0 %v150
    %156 = vmatpush.msra.mxu0 %v149
    %157 = vmatpush.msra.mxu0 %v148
    %158 = vmatpush.msra.mxu0 %v147
    %159 = vmatpush.msra.mxu0 %v146
    %160 = vmatpush.msra.mxu0 %v145
    %161 = vmatpush.msra.mxu0 %v144
    %162 = vmatpush.msra.mxu0 %v143
    %163 = vmatpush.msra.mxu0 %v142
    %164 = vmatpush.msra.mxu0 %v141
    %165 = vmatpush.msra.mxu0 %v140
    %166 = vmatpush.msra.mxu0 %v139
    %167 = vmatpush.msra.mxu0 %v138
    %168 = vmatpush.msra.mxu0 %v137
    %169 = vmatpush.msra.mxu0 %v136
    %170 = vmatpush.msra.mxu0 %v135
    %171 = vmatmul.f32.gmra.mxu0 %v131
    %v172 = vpop.f32.mrf.mxu0
    %v173 = vadd.f32 %v153, %v172
    %174 = vmatmul.f32.gmra.mxu0 %v132
    %v175 = vpop.f32.mrf.mxu0
    %v176 = vadd.f32 %v153, %v175
    %177 = vmatmul.f32.gmra.mxu0 %v133
    %v178 = vpop.f32.mrf.mxu0
    %v179 = vadd.f32 %v153, %v178
    %180 = vmatmul.f32.gmra.mxu0 %v134
    %v181 = vpop.f32.mrf.mxu0
    %v182 = vadd.f32 %v153, %v181
    %183 = vdwg.mxu0
    %v184 = vmax.f32 %v173, 0.0
    %v185 = vmax.f32 %v176, 0.0
    %v186 = vmax.f32 %v179, 0.0
    %v187 = vmax.f32 %v182, 0.0
    %v188 = vld [vmem:[#allocation7] sm:$0xff]
    %v189 = vld [vmem:[#allocation7 + $0x8] sm:$0xff]
    %v190 = vld [vmem:[#allocation7 + $0x10] sm:$0xff]
    %v191 = vld [vmem:[#allocation7 + $0x18] sm:$0xff]
    %v192 = vld [vmem:[#allocation7 + $0x20] sm:$0xff]
    %v193 = vld [vmem:[#allocation7 + $0x28] sm:$0xff]
    %v194 = vld [vmem:[#allocation7 + $0x30] sm:$0xff]
    %v195 = vld [vmem:[#allocation7 + $0x38] sm:$0xff]
    %v196 = vld [vmem:[#allocation7 + $0x40] sm:$0xff]
    %v197 = vld [vmem:[#allocation7 + $0x48] sm:$0xff]
    %v198 = vld [vmem:[#allocation7 + $0x50] sm:$0xff]
    %v199 = vld [vmem:[#allocation7 + $0x58] sm:$0xff]
    %v200 = vld [vmem:[#allocation7 + $0x60] sm:$0xff]
    %v201 = vld [vmem:[#allocation7 + $0x68] sm:$0xff]
    %v202 = vld [vmem:[#allocation7 + $0x70] sm:$0xff]
    %v203 = vld [vmem:[#allocation7 + $0x78] sm:$0xff]
    %v204 = vld [vmem:[%s7] sm:$0x1]
    %v206 = vperm.slane %v204, 0
    %208 = vmatpush.msra.mxu0 %v203
    %209 = vmatpush.msra.mxu0 %v202
    %210 = vmatpush.msra.mxu0 %v201
    %211 = vmatpush.msra.mxu0 %v200
    %212 = vmatpush.msra.mxu0 %v199
    %213 = vmatpush.msra.mxu0 %v198
    %214 = vmatpush.msra.mxu0 %v197
    %215 = vmatpush.msra.mxu0 %v196
    %216 = vmatpush.msra.mxu0 %v195
    %217 = vmatpush.msra.mxu0 %v194
    %218 = vmatpush.msra.mxu0 %v193
    %219 = vmatpush.msra.mxu0 %v192
    %220 = vmatpush.msra.mxu0 %v191
    %221 = vmatpush.msra.mxu0 %v190
    %222 = vmatpush.msra.mxu0 %v189
    %223 = vmatpush.msra.mxu0 %v188
    %224 = vmatmul.f32.gmra.mxu0 %v184
    %v225 = vpop.f32.mrf.mxu0
    %v226 = vadd.f32 %v206, %v225
    %227 = vmatmul.f32.gmra.mxu0 %v185
    %v228 = vpop.f32.mrf.mxu0
    %v229 = vadd.f32 %v206, %v228
    %230 = vmatmul.f32.gmra.mxu0 %v186
    %v231 = vpop.f32.mrf.mxu0
    %v232 = vadd.f32 %v206, %v231
    %233 = vmatmul.f32.gmra.mxu0 %v187
    %v234 = vpop.f32.mrf.mxu0
    %v235 = vadd.f32 %v206, %v234
    %236 = vdwg.mxu0
    %v237 = vld [vmem:[%s3] sm:$0xf]
    %v239 = vsel %vm104, %v237, 0
    %241 = vmatpush.bf16.msra.mxu0 0
    %242 = vmatpush.bf16.msra.mxu0 0
    %243 = vmatpush.bf16.msra.mxu0 0
    %244 = vmatpush.bf16.msra.mxu0 0
    %245 = vmatpush.bf16.msra.mxu0 0
    %246 = vmatpush.bf16.msra.mxu0 0
    %247 = vmatpush.bf16.msra.mxu0 0
    %248 = vmatpush.bf16.msra.mxu0 %v239
    %249 = vmatmul.bf16.gmra.mxu0 %v99
    %v250 = vpop.f32.mrf.mxu0
    %v251 = vadd.f32 0.0, %v250
    %v252 = vpop.f32.mrf.mxu0
    %v253 = vadd.f32 0.0, %v252
    %254 = vmatmul.bf16.gmra.mxu0 %v102
    %v255 = vpop.f32.mrf.mxu0
    %v256 = vadd.f32 0.0, %v255
    %v257 = vpop.f32.mrf.mxu0
    %v258 = vadd.f32 0.0, %v257
    %259 = vdwg.mxu0
    %v260 = vsub.f32 1.0, %v251
    %v261 = vsub.f32 1.0, %v253
    %v262 = vsub.f32 1.0, %v256
    %v263 = vsub.f32 1.0, %v258
    %v264 = vmul.f32 %v226, %v260
    %v265 = vmul.f32 %v229, %v261
    %v266 = vmul.f32 %v232, %v262
    %v267 = vmul.f32 %v235, %v263
    %268 = vst [vmem:[#allocation8] sm:$0xff] %v264
    %269 = vst [vmem:[#allocation8 + $0x8] sm:$0xff] %v265
    %270 = vst [vmem:[#allocation8 + $0x10] sm:$0xff] %v266
    %271 = vst [vmem:[#allocation8 + $0x18] sm:$0xff] %v267
    // Predicated region
    $region46: #{tpu_custom_call.1} parent=1 // pred_check
      _
    $region47: #{tpu_custom_call.1} parent=1 // pred_check_branch
      %273 = sbr.rel (0) target = $region49
    $region48: #{tpu_custom_call.1} parent=1 // pred_region
      %275 = vsyncadd [#allocation4], 0
      %s276 = sshll.u32 [#allocation8], 4
      %s277 = int_to_ptr.vmem [resolvable:$true] %s276
      %s278 = sshll.u32 %s8, 4
      %s279 = int_to_ptr.hbm [resolvable:$true] %s278
      %284 = dma.vmem_to_hbm [thread:$0]  %s277, 512, %s279, [#allocation4], 128, 128, 8
    $region49: #{tpu_custom_call.1} parent=1 // pred_fallthru
      _
    // Predicated region
    $region50: #{tpu_custom_call.1} parent=1 // pred_check
      _
    $region51: #{tpu_custom_call.1} parent=1 // pred_check_branch
      %286 = sbr.rel (0) target = $region53
    $region52: #{tpu_custom_call.1} parent=1 // pred_region
      %288 = dma.done [#allocation4], 512
    $region53: #{tpu_custom_call.1} parent=1 // pred_fallthru
      _
    %289 = vsyncpa [#allocation3], 1
    %290 = vsyncpa [#allocation6], 1
    %291 = vsyncpa [#allocation4], 1

</llo_original>
